<compile_context>
chip_gen: v7x
topology: tpu7x:2x2x1
jax: 0.10.0
libtpu: 0.0.40
codegen_flags: <defaults>
</compile_context>

<pallas_src>
import jax
import jax.numpy as jnp
from jax import lax
from jax.experimental import pallas as pl
from jax.experimental.pallas import tpu as pltpu


def _round_up(n, m):
    return ((n + m - 1) // m) * m


def _pick_fold(S: int, D: int) -> int:
    """Largest k (k*D <= 128) that divides S, so the reshape is a free bitcast."""
    if D >= 128:
        return 1
    kmax = max(1, 128 // D)
    for k in range(kmax, 0, -1):
        if S % k == 0:
            return k
    return 1


def _default_target_bytes() -> int:
    """Per-input-block target (double-buffered by the BlockSpec pipeline)."""
    try:
        kind = jax.devices()[0].device_kind.lower()
    except Exception:
        kind = ""
    big_vmem = any(tag in kind for tag in ("v6", "v7", "7x"))
    # v6e/v7x: 32 MiB default scoped VMEM -> 8 MiB blocks (16 MiB live).
    # v5e (and anything unknown): 16 MiB scoped -> 4 MiB blocks (8 MiB live).
    return (8 if big_vmem else 4) * 1024 * 1024


def _make_stats_pool_kernel(S: int, S_f: int, TS: int, D: int, k: int,
                            needs_mask: bool):
    """S: true seq length; S_f = S//k folded rows; TS: folded seq tile."""
    inv_n = 1.0 / S
    inv_nm1 = (1.0 / (S - 1)) if S > 1 else float("nan")  # torch: NaN for S==1

    def combine_groups(a):
        # (TB, k*D) -> (TB, D): sum the k lane groups (finalize only, tiny).
        if k == 1:
            return a
        out = a[:, 0:D]
        for g in range(1, k):
            out = out + a[:, g * D:(g + 1) * D]
        return out

    def kernel(x_ref, shift_ref, o_ref, sum_ref, sumsq_ref):
        si = pl.program_id(1)
        last = pl.num_programs(1) - 1

        @pl.when(si == 0)
        def _init():
            sum_ref[...] = jnp.zeros_like(sum_ref)
            sumsq_ref[...] = jnp.zeros_like(sumsq_ref)

        def accumulate(mask_tail):
            # Single f32 cast; shifted moments (x - c) for numerical robustness.
            xs = x_ref[...].astype(jnp.float32) - shift_ref[...]  # (TB,TS,DL)
            if mask_tail:
                row = si * TS + lax.broadcasted_iota(jnp.int32, (1, TS, 1), 1)
                # Mask AFTER the shift, BEFORE the square: padded rows add 0.
                xs = jnp.where(row < S_f, xs, 0.0)
            sum_ref[...] += jnp.sum(xs, axis=1)
            sumsq_ref[...] += jnp.sum(xs * xs, axis=1)

        if needs_mask:
            # Unmasked steady state; mask only on the last (ragged) tile.
            @pl.when(si != last)
            def _steady():
                accumulate(False)

            @pl.when(si == last)
            def _tail():
                accumulate(True)
        else:
            accumulate(False)

        @pl.when(si == last)
        def _finalize():
            s1 = combine_groups(sum_ref[...])     # (TB, D)  sum(x - c)
            s2 = combine_groups(sumsq_ref[...])   # (TB, D)  sum((x - c)^2)
            c0 = shift_ref[...][:, 0, 0:D]        # (TB, D)  per-feature shift
            m0 = s1 * jnp.float32(inv_n)          # mean - c
            var = (s2 - jnp.float32(S) * m0 * m0) * jnp.float32(inv_nm1)
            var = jnp.maximum(var, 0.0)           # guard tiny negative
            o_ref[:, 0, :] = (m0 + c0).astype(o_ref.dtype)
            o_ref[:, 1, :] = jnp.sqrt(var).astype(o_ref.dtype)

    return kernel


def stats_pooling(x: jax.Array, *, seq_tile: int | None = None,
                  batch_tile: int | None = None,
                  target_block_bytes: int | None = None) -> jax.Array:
    """x: [B, S, D] -> [B, 2*D]  (mean ++ unbiased std over seq axis)."""
    B, S, D = x.shape
    itemsize = jnp.dtype(x.dtype).itemsize

    # Lane folding: (B, S, D) -> (B, S//k, k*D); free row-major reshape.
    k = _pick_fold(S, D)
    S_f, DL = S // k, k * D
    x_f = x.reshape(B, S_f, DL) if k > 1 else x

    # Per-feature shift (first timestep), tiled across the k folded groups.
    shift = jnp.tile(x[:, :1, :].astype(jnp.float32), (1, 1, k))  # (B, 1, DL)

    # Batch tile: >= 2 batch tiles whenever B >= 2 so the "parallel" axis can
    # feed both v7x TensorCores; capped at 8.
    if batch_tile is not None:
        TB = min(batch_tile, B)
    else:
        TB = min(8, max(1, B // 2))

    # Sublane granularity: 8 for 4-byte, 16 for 2-byte, 32 for 1-byte dtypes.
    sub = 8 * max(1, 4 // itemsize)
    if seq_tile is None:
        target = target_block_bytes or _default_target_bytes()
        ts = max(sub, (target // max(TB * DL * itemsize, 1)) // sub * sub)
    else:
        ts = max(sub, _round_up(seq_tile, sub))
    # Full-extent block is always legal; avoids masking for single-tile shapes.
    TS = ts if ts < S_f else S_f
    needs_mask = (S_f % TS) != 0

    grid = (pl.cdiv(B, TB), pl.cdiv(S_f, TS))
    kernel = _make_stats_pool_kernel(S, S_f, TS, D, k, needs_mask)

    out3 = pl.pallas_call(
        kernel,
        out_shape=jax.ShapeDtypeStruct((B, 2, D), x.dtype),
        grid=grid,
        in_specs=[
            pl.BlockSpec((TB, TS, DL), lambda bi, si: (bi, si, 0)),
            pl.BlockSpec((TB, 1, DL), lambda bi, si: (bi, 0, 0)),
        ],
        out_specs=pl.BlockSpec((TB, 2, D), lambda bi, si: (bi, 0, 0)),
        scratch_shapes=[
            pltpu.VMEM((TB, DL), jnp.float32),   # running sum(x - c)
            pltpu.VMEM((TB, DL), jnp.float32),   # running sum((x - c)^2)
        ],
        compiler_params=pltpu.CompilerParams(
            dimension_semantics=("parallel", "arbitrary"),
        ),
        cost_estimate=pl.CostEstimate(
            flops=4 * B * S * D,
            transcendentals=B * D,
            bytes_accessed=B * S * D * itemsize + B * DL * 4
                           + 2 * B * D * itemsize,
        ),
    )(x_f, shift)

    # (B, 2, D) -> (B, 2*D): row-major reshape == cat([mean, std], dim=1).
    return out3.reshape(B, 2 * D)


def _reference(x):
    mean = jnp.mean(x, axis=1)
    n = x.shape[1]
    var = jnp.sum((x - mean[:, None, :]) ** 2, axis=1) / (n - 1)
    return jnp.concatenate([mean, jnp.sqrt(var)], axis=1)


if __name__ == "__main__":
    key = jax.random.PRNGKey(0)
    k1, k2, k3 = jax.random.split(key, 3)

    # Case 1: lane-folded path (D=32 -> k=4 -> 128 lanes), single seq tile.
    # DC offset exercises the shifted-moment path.
    B, S, D = 2, 8, 32
    x = jax.random.normal(k1, (B, S, D), dtype=jnp.float32) + 3.0
    out = jax.block_until_ready(stats_pooling(x))
    assert out.shape == (B, 2 * D), out.shape
    assert jnp.allclose(out, _reference(x), atol=1e-5, rtol=1e-5)

    # Case 2: ragged folded seq (S_f=12, tile=8 -> masked-tail branch).
    B2, S2, D2 = 2, 48, 32
    x2 = jax.random.normal(k2, (B2, S2, D2), dtype=jnp.float32)
    out2 = jax.block_until_ready(stats_pooling(x2, seq_tile=8))
    assert jnp.allclose(out2, _reference(x2), atol=1e-5, rtol=1e-5)

    # Case 3: no-fold fallback (prime S), full-extent seq block.
    B3, S3, D3 = 2, 7, 32
    x3 = jax.random.normal(k3, (B3, S3, D3), dtype=jnp.float32)
    out3 = jax.block_until_ready(stats_pooling(x3))
    assert jnp.allclose(out3, _reference(x3), atol=1e-5, rtol=1e-5)

    print("KERNEL_OK")
</pallas_src>

<mosaic_0001>
module attributes {stable_mosaic.version = 11 : i64} {
  func.func @kernel(%arg0: i32, %arg1: i32, %arg2: memref<1x2x128xf32, #tpu.memory_space<vmem>>, %arg3: memref<1x1x128xf32, #tpu.memory_space<vmem>>, %arg4: memref<1x2x32xf32, #tpu.memory_space<vmem>>, %arg5: memref<1x128xf32, #tpu.memory_space<vmem>>, %arg6: memref<1x128xf32, #tpu.memory_space<vmem>>) attributes {dimension_semantics = [#tpu.dimension_semantics<parallel>, #tpu.dimension_semantics<arbitrary>], iteration_bounds = array<i64: 2, 1>, scalar_prefetch = 0 : i64, scratch_operands = 2 : i64, tpu.core_type = #tpu.core_type<tc>, window_params = [{transform_indices = @transform_0, window_bounds = array<i64: 1, 2, 128>}, {transform_indices = @transform_1, window_bounds = array<i64: 1, 1, 128>}, {transform_indices = @transform_2, window_bounds = array<i64: 1, 2, 32>}]} {
    %c0_i32 = arith.constant 0 : i32
    %0 = arith.cmpi eq, %arg1, %c0_i32 : i32
    %1 = arith.extui %0 : i1 to i32
    %c0_i32_0 = arith.constant 0 : i32
    %2 = arith.cmpi ne, %1, %c0_i32_0 : i32
    scf.if %2 {
      %cst_17 = arith.constant 0.000000e+00 : f32
      %19 = vector.broadcast %cst_17 : f32 to vector<1x128xf32>
      %c0_18 = arith.constant 0 : index
      %c0_19 = arith.constant 0 : index
      %20 = vector.load %arg5[%c0_18, %c0_19] : memref<1x128xf32, #tpu.memory_space<vmem>>, vector<1x128xf32>
      tpu.vector_store %arg5[%c0_18, %c0_19], %19 {strides = array<i32>} : memref<1x128xf32, #tpu.memory_space<vmem>>, vector<1x128xf32>,
      %cst_20 = arith.constant 0.000000e+00 : f32
      %21 = vector.broadcast %cst_20 : f32 to vector<1x128xf32>
      %c0_21 = arith.constant 0 : index
      %c0_22 = arith.constant 0 : index
      %22 = vector.load %arg6[%c0_21, %c0_22] : memref<1x128xf32, #tpu.memory_space<vmem>>, vector<1x128xf32>
      tpu.vector_store %arg6[%c0_21, %c0_22], %21 {strides = array<i32>} : memref<1x128xf32, #tpu.memory_space<vmem>>, vector<1x128xf32>,
    } else {
    }
    %c0 = arith.constant 0 : index
    %c0_1 = arith.constant 0 : index
    %c0_2 = arith.constant 0 : index
    %3 = vector.load %arg2[%c0, %c0_1, %c0_2] : memref<1x2x128xf32, #tpu.memory_space<vmem>>, vector<1x2x128xf32>
    %c0_3 = arith.constant 0 : index
    %c0_4 = arith.constant 0 : index
    %c0_5 = arith.constant 0 : index
    %4 = vector.load %arg3[%c0_3, %c0_4, %c0_5] : memref<1x1x128xf32, #tpu.memory_space<vmem>>, vector<1x1x128xf32>
    %5 = vector.broadcast %4 : vector<1x1x128xf32> to vector<1x2x128xf32>
    %6 = arith.subf %3, %5 : vector<1x2x128xf32>
    %c0_6 = arith.constant 0 : index
    %c0_7 = arith.constant 0 : index
    %7 = vector.load %arg5[%c0_6, %c0_7] : memref<1x128xf32, #tpu.memory_space<vmem>>, vector<1x128xf32>
    %cst = arith.constant dense<0.000000e+00> : vector<1x128xf32>
    %8 = vector.multi_reduction <add>, %6, %cst [1] : vector<1x2x128xf32> to vector<1x128xf32>
    %9 = arith.addf %7, %8 : vector<1x128xf32>
    %c0_8 = arith.constant 0 : index
    %c0_9 = arith.constant 0 : index
    %10 = vector.load %arg5[%c0_8, %c0_9] : memref<1x128xf32, #tpu.memory_space<vmem>>, vector<1x128xf32>
    tpu.vector_store %arg5[%c0_8, %c0_9], %9 {strides = array<i32>} : memref<1x128xf32, #tpu.memory_space<vmem>>, vector<1x128xf32>,
    %c0_10 = arith.constant 0 : index
    %c0_11 = arith.constant 0 : index
    %11 = vector.load %arg6[%c0_10, %c0_11] : memref<1x128xf32, #tpu.memory_space<vmem>>, vector<1x128xf32>
    %12 = arith.mulf %6, %6 : vector<1x2x128xf32>
    %cst_12 = arith.constant dense<0.000000e+00> : vector<1x128xf32>
    %13 = vector.multi_reduction <add>, %12, %cst_12 [1] : vector<1x2x128xf32> to vector<1x128xf32>
    %14 = arith.addf %11, %13 : vector<1x128xf32>
    %c0_13 = arith.constant 0 : index
    %c0_14 = arith.constant 0 : index
    %15 = vector.load %arg6[%c0_13, %c0_14] : memref<1x128xf32, #tpu.memory_space<vmem>>, vector<1x128xf32>
    tpu.vector_store %arg6[%c0_13, %c0_14], %14 {strides = array<i32>} : memref<1x128xf32, #tpu.memory_space<vmem>>, vector<1x128xf32>,
    %c0_i32_15 = arith.constant 0 : i32
    %16 = arith.cmpi eq, %arg1, %c0_i32_15 : i32
    %17 = arith.extui %16 : i1 to i32
    %c0_i32_16 = arith.constant 0 : i32
    %18 = arith.cmpi ne, %17, %c0_i32_16 : i32
    scf.if %18 {
      %c0_17 = arith.constant 0 : index
      %c0_18 = arith.constant 0 : index
      %19 = vector.load %arg5[%c0_17, %c0_18] : memref<1x128xf32, #tpu.memory_space<vmem>>, vector<1x128xf32>
      %20 = vector.extract_strided_slice %19 {offsets = [0, 0], sizes = [1, 32], strides = [1, 1]} : vector<1x128xf32> to vector<1x32xf32>
      %21 = vector.extract_strided_slice %19 {offsets = [0, 32], sizes = [1, 32], strides = [1, 1]} : vector<1x128xf32> to vector<1x32xf32>
      %22 = arith.addf %20, %21 : vector<1x32xf32>
      %23 = vector.extract_strided_slice %19 {offsets = [0, 64], sizes = [1, 32], strides = [1, 1]} : vector<1x128xf32> to vector<1x32xf32>
      %24 = arith.addf %22, %23 : vector<1x32xf32>
      %25 = vector.extract_strided_slice %19 {offsets = [0, 96], sizes = [1, 32], strides = [1, 1]} : vector<1x128xf32> to vector<1x32xf32>
      %26 = arith.addf %24, %25 : vector<1x32xf32>
      %c0_19 = arith.constant 0 : index
      %c0_20 = arith.constant 0 : index
      %27 = vector.load %arg6[%c0_19, %c0_20] : memref<1x128xf32, #tpu.memory_space<vmem>>, vector<1x128xf32>
      %28 = vector.extract_strided_slice %27 {offsets = [0, 0], sizes = [1, 32], strides = [1, 1]} : vector<1x128xf32> to vector<1x32xf32>
      %29 = vector.extract_strided_slice %27 {offsets = [0, 32], sizes = [1, 32], strides = [1, 1]} : vector<1x128xf32> to vector<1x32xf32>
      %30 = arith.addf %28, %29 : vector<1x32xf32>
      %31 = vector.extract_strided_slice %27 {offsets = [0, 64], sizes = [1, 32], strides = [1, 1]} : vector<1x128xf32> to vector<1x32xf32>
      %32 = arith.addf %30, %31 : vector<1x32xf32>
      %33 = vector.extract_strided_slice %27 {offsets = [0, 96], sizes = [1, 32], strides = [1, 1]} : vector<1x128xf32> to vector<1x32xf32>
      %34 = arith.addf %32, %33 : vector<1x32xf32>
      %c0_21 = arith.constant 0 : index
      %c0_22 = arith.constant 0 : index
      %c0_23 = arith.constant 0 : index
      %35 = vector.load %arg3[%c0_21, %c0_22, %c0_23] : memref<1x1x128xf32, #tpu.memory_space<vmem>>, vector<1x1x128xf32>
      %36 = vector.extract_strided_slice %35 {offsets = [0, 0, 0], sizes = [1, 1, 32], strides = [1, 1, 1]} : vector<1x1x128xf32> to vector<1x1x32xf32>
      %37 = vector.shape_cast %36 : vector<1x1x32xf32> to vector<1x32xf32>
      %cst_24 = arith.constant 1.250000e-01 : f32
      %38 = vector.broadcast %cst_24 : f32 to vector<1x32xf32>
      %39 = arith.mulf %26, %38 : vector<1x32xf32>
      %cst_25 = arith.constant 8.000000e+00 : f32
      %40 = vector.broadcast %cst_25 : f32 to vector<1x32xf32>
      %41 = arith.mulf %40, %39 : vector<1x32xf32>
      %42 = arith.mulf %41, %39 : vector<1x32xf32>
      %43 = arith.subf %34, %42 : vector<1x32xf32>
      %cst_26 = arith.constant 0.142857149 : f32
      %44 = vector.broadcast %cst_26 : f32 to vector<1x32xf32>
      %45 = arith.mulf %43, %44 : vector<1x32xf32>
      %cst_27 = arith.constant 0.000000e+00 : f32
      %46 = vector.broadcast %cst_27 : f32 to vector<1x32xf32>
      %47 = arith.maximumf %45, %46 : vector<1x32xf32>
      %48 = arith.addf %39, %37 : vector<1x32xf32>
      %c0_28 = arith.constant 0 : index
      %c0_29 = arith.constant 0 : index
      %c0_30 = arith.constant 0 : index
      %49 = vector.load %arg4[%c0_28, %c0_29, %c0_30] : memref<1x2x32xf32, #tpu.memory_space<vmem>>, vector<1x1x32xf32>
      %50 = vector.shape_cast %49 : vector<1x1x32xf32> to vector<1x32xf32>
      %51 = vector.shape_cast %48 : vector<1x32xf32> to vector<1x1x32xf32>
      tpu.vector_store %arg4[%c0_28, %c0_29, %c0_30], %51 {strides = array<i32>} : memref<1x2x32xf32, #tpu.memory_space<vmem>>, vector<1x1x32xf32>,
      %52 = math.sqrt %47 : vector<1x32xf32>
      %c0_31 = arith.constant 0 : index
      %c1 = arith.constant 1 : index
      %c0_32 = arith.constant 0 : index
      %53 = vector.load %arg4[%c0_31, %c1, %c0_32] : memref<1x2x32xf32, #tpu.memory_space<vmem>>, vector<1x1x32xf32>
      %54 = vector.shape_cast %53 : vector<1x1x32xf32> to vector<1x32xf32>
      %55 = vector.shape_cast %52 : vector<1x32xf32> to vector<1x1x32xf32>
      tpu.vector_store %arg4[%c0_31, %c1, %c0_32], %55 {strides = array<i32>} : memref<1x2x32xf32, #tpu.memory_space<vmem>>, vector<1x1x32xf32>,
    } else {
    }
    return
  }
  func.func @transform_0(%arg0: i32, %arg1: i32) -> (i32, i32, i32) {
    %c0_i32 = arith.constant 0 : i32
    %c0_i32_0 = arith.constant 0 : i32
    return %arg0, %arg1, %c0_i32 : i32, i32, i32
  }
  func.func @transform_1(%arg0: i32, %arg1: i32) -> (i32, i32, i32) {
    %c0_i32 = arith.constant 0 : i32
    %c0_i32_0 = arith.constant 0 : i32
    %c0_i32_1 = arith.constant 0 : i32
    return %arg0, %c0_i32, %c0_i32_0 : i32, i32, i32
  }
  func.func @transform_2(%arg0: i32, %arg1: i32) -> (i32, i32, i32) {
    %c0_i32 = arith.constant 0 : i32
    %c0_i32_0 = arith.constant 0 : i32
    %c0_i32_1 = arith.constant 0 : i32
    return %arg0, %c0_i32, %c0_i32_0 : i32, i32, i32
  }
}

</mosaic_0001>

<llo_original>
// kernel: tpu_custom_call.1
$region0: #{tpu_custom_call.1}
  #allocation0 [shape = 'u32[]', space=smem, size = 0x4, offset = 0x4, fixed_abs, tag = 'smem constant byte address 0x4 - core index']
  #allocation1 [shape = 'u32[144,128]{1,0:T(1,128)}', space=vmem, size = 0x12000, scoped, tag = 'internal scratch']
  #allocation2 [shape = 'f32[1,128]{1,0:T(1,128)}', space=vmem, size = 0x200, scoped, tag = 'scratch operand']
  #allocation3 [shape = 'f32[1,128]{1,0:T(1,128)}', space=vmem, size = 0x200, scoped, tag = 'scratch operand']
  %s0 = inlined_call_operand.hbm [shape: f32[2,2,128], index: 0, kind: input, shape index: {}]
  %s1 = inlined_call_operand.vmem [shape: f32[2,1,128], index: 1, kind: input, shape index: {}]
  %s2 = inlined_call_operand.hbm [shape: f32[2,2,32], index: 2, kind: output, shape index: {}]
  %s3 = sld [smem:[#allocation0]]
  $region53: #{tpu_custom_call.1} parent=0
    _
  %s5 = ssub.s32 1, %s3
  %s6 = scalar_select 0, %s5, %s3
  $region1: #{tpu_custom_call.1} parent=0
    #allocation4 [shape = 'u8[2048]{0}', space=vmem, size = 0x800, scoped, tag = 'input window, operand 0']
    #allocation5 [shape = 's32[2]{0}', space=sflag, size = 0x8, scoped, tag = 'scoped memory for tpu_custom_call.1']
    #allocation6 [shape = 's32[2]{0}', space=sflag, size = 0x8, scoped, tag = 'scoped memory for tpu_custom_call.1']
    #allocation7 [shape = 'u8[2048]{0}', space=vmem, size = 0x800, scoped, tag = 'output window, operand 0']
    %7 = vsyncpa [#allocation5], 0
    %s8 = scalar_lea.sflag [#allocation5], 1
    %9 = vsyncpa %s8, 0
    %10 = vsyncpa [#allocation6], 0
    %s11 = scalar_lea.sflag [#allocation6], 1
    %12 = vsyncpa %s11, 0
    loop: start=0, step=1, limit=4
    $region2: #{tpu_custom_call.1} parent=1 // loop_pre_header
      _
    $region3: #{tpu_custom_call.1} parent=1 // loop_header
      %s14 = sphi 0, %s18
      %p15 = scmp.ge.s32.totalorder %s14, 4
      %s21 = sphi 0, %s33
      %s22 = sphi 0, %s29
      %s23 = sphi 0, %s21
      %s24 = sphi 0, %s22
      %s25 = sphi 0, %s23
      %s26 = sphi 0, %s24
      %s38 = sphi 0, %s40
      %s41 = sphi 0, %s38
      %s42 = sphi 0, %s41
      %s58 = sphi 0, %s42
      %s64 = sphi 0, %s66
      %s67 = sphi 0, %s64
      %s68 = sphi 0, %s67
      %s84 = sphi 0, %s68
      %s90 = sphi 0, %s92
      %s93 = sphi 0, %s90
      %s94 = sphi 0, %s93
      %s110 = sphi 0, %s94
    $region4: #{tpu_custom_call.1} parent=1 // loop_header_branch
      %17 = sbr.rel (%p15) target = $region8
    $region5: #{tpu_custom_call.1} parent=1 // loop_body
      %s19 = ssub.s32 %s14, 1
      %s20 = ssub.s32 %s14, 2
      %s27 = sadd.s32 1, %s22
      %p28 = scmp.ge.s32.totalorder %s27, 1
      %s29 = scalar_select %p28, 0, %s27
      %s30 = sadd.s32 1, %s21
      %s31 = scalar_select %p28, %s30, %s21
      %p32 = scmp.ge.s32.totalorder %s31, 2
      %s33 = scalar_select %p32, 0, %s31
      %s34 = ssub.s32 %s21, %s33
      %s35 = ssub.s32 %s22, %s29
      %s36 = sor.u32 %s34, %s35
      %p37 = scmp.eq.s32.totalorder %s36, 0
      %s39 = sadd.s32 %s38, 1
      %s40 = scalar_select %p37, %s38, %s39
      %p43 = pneg %p37
      %p44 = scmp.eq.s32.totalorder %s14, 1
      %p45 = por %p43, %p44
      %p46 = scmp.ne.s32.totalorder %s38, %s41
      %p47 = scmp.eq.s32.totalorder %s14, 0
      %p48 = por %p46, %p47
      %p49 = scmp.ne.s32.totalorder %s38, %s41
      %p50 = scmp.eq.s32.totalorder %s19, 1
      %p51 = por %p49, %p50
      %p52 = scmp.ne.s32.totalorder %s41, %s42
      %p53 = scmp.eq.s32.totalorder %s19, 0
      %p54 = por %p52, %p53
      %p55 = scmp.ne.s32.totalorder %s41, %s42
      %p56 = scmp.eq.s32.totalorder %s20, 1
      %p57 = por %p55, %p56
      %p59 = scmp.ne.s32.totalorder %s42, %s58
      %p60 = scmp.eq.s32.totalorder %s20, 0
      %p61 = por %p59, %p60
      %s62 = ssub.s32 %s21, %s33
      %p63 = scmp.eq.s32.totalorder %s62, 0
      %s65 = sadd.s32 %s64, 1
      %s66 = scalar_select %p63, %s64, %s65
      %p69 = pneg %p63
      %p70 = scmp.eq.s32.totalorder %s14, 1
      %p71 = por %p69, %p70
      %p72 = scmp.ne.s32.totalorder %s64, %s67
      %p73 = scmp.eq.s32.totalorder %s14, 0
      %p74 = por %p72, %p73
      %p75 = scmp.ne.s32.totalorder %s64, %s67
      %p76 = scmp.eq.s32.totalorder %s19, 1
      %p77 = por %p75, %p76
      %p78 = scmp.ne.s32.totalorder %s67, %s68
      %p79 = scmp.eq.s32.totalorder %s19, 0
      %p80 = por %p78, %p79
      %p81 = scmp.ne.s32.totalorder %s67, %s68
      %p82 = scmp.eq.s32.totalorder %s20, 1
      %p83 = por %p81, %p82
      %p85 = scmp.ne.s32.totalorder %s68, %s84
      %p86 = scmp.eq.s32.totalorder %s20, 0
      %p87 = por %p85, %p86
      %s88 = ssub.s32 %s21, %s33
      %p89 = scmp.eq.s32.totalorder %s88, 0
      %s91 = sadd.s32 %s90, 1
      %s92 = scalar_select %p89, %s90, %s91
      %p95 = pneg %p89
      %p96 = scmp.eq.s32.totalorder %s14, 1
      %p97 = por %p95, %p96
      %p98 = scmp.ne.s32.totalorder %s90, %s93
      %p99 = scmp.eq.s32.totalorder %s14, 0
      %p100 = por %p98, %p99
      %p101 = scmp.ne.s32.totalorder %s90, %s93
      %p102 = scmp.eq.s32.totalorder %s19, 1
      %p103 = por %p101, %p102
      %p104 = scmp.ne.s32.totalorder %s93, %s94
      %p105 = scmp.eq.s32.totalorder %s19, 0
      %p106 = por %p104, %p105
      %p107 = scmp.ne.s32.totalorder %s93, %s94
      %p108 = scmp.eq.s32.totalorder %s20, 1
      %p109 = por %p107, %p108
      %p111 = scmp.ne.s32.totalorder %s94, %s110
      %p112 = scmp.eq.s32.totalorder %s20, 0
      %p113 = por %p111, %p112
      %p114 = scmp.le.s32.totalorder 1, %s14
      %p115 = scmp.lt.s32.totalorder %s14, 3
      %p116 = pnand %p114, %p115
      %p117 = pneg %p116
      // Predicated region
      $region9: #{tpu_custom_call.1} parent=5 // pred_check
        _
      $region10: #{tpu_custom_call.1} parent=5 // pred_check_branch
        %119 = sbr.rel (%p116) target = $region12
      $region11: #{tpu_custom_call.1} parent=5 // pred_region
        %s120 = ssub.s32 %s14, 1
      $region12: #{tpu_custom_call.1} parent=5 // pred_fallthru
        _
      %p121 = scmp.lt.s32.totalorder %s14, 2
      // Predicated region
      $region13: #{tpu_custom_call.1} parent=5 // pred_check
        %p122 = pneg %p121
      $region14: #{tpu_custom_call.1} parent=5 // pred_check_branch
        %124 = sbr.rel (%p122) target = $region16
      $region15: #{tpu_custom_call.1} parent=5 // pred_region
        // Predicated region
        $region17: #{tpu_custom_call.1} parent=15 // pred_check
          %p125 = pneg %p48
        $region18: #{tpu_custom_call.1} parent=15 // pred_check_branch
          %127 = sbr.rel (%p125) target = $region20
        $region19: #{tpu_custom_call.1} parent=15 // pred_region
          %s128 = sand.u32 %s38, 1
          %s129 = scalar_lea.sflag [#allocation5], %s128
          %s130 = sand.u32 %s38, 1
          %s131 = smul.addr %s130, 2
          %s132 = scalar_lea.vmem [#allocation4], %s131
          %s134 = ssub.s32 32, 32
          %135 = vsyncadd %s129, %s134
          %s136 = sadd.s32 %s22, %s21
          %s137 = smul.addr %s136, 32
          %s138 = scalar_lea.hbm %s0, %s137
          %s140 = sshll.u32 %s132, 4
          %s141 = int_to_ptr.vmem [resolvable:$true] %s140
          %143 = dma.hbm_to_vmem [thread:$0]  %s138, 32, %s141, %s129
        $region20: #{tpu_custom_call.1} parent=15 // pred_fallthru
          _
        // Predicated region
        $region21: #{tpu_custom_call.1} parent=15 // pred_check
          %p144 = pneg %p74
        $region22: #{tpu_custom_call.1} parent=15 // pred_check_branch
          %146 = sbr.rel (%p144) target = $region24
        $region23: #{tpu_custom_call.1} parent=15 // pred_region
          %p147 = scmp.lt.s32.totalorder %s21, 1
          %s148 = scalar_select %p147, %s21, 1
          %s149 = scalar_lea.vmem %s1, %s148
        $region24: #{tpu_custom_call.1} parent=15 // pred_fallthru
          _
      $region16: #{tpu_custom_call.1} parent=5 // pred_fallthru
        _
      %p150 = scmp.le.s32.totalorder 1, %s14
      %p151 = scmp.lt.s32.totalorder %s14, 3
      %p152 = pnand %p150, %p151
      %p153 = pneg %p152
      // Predicated region
      $region25: #{tpu_custom_call.1} parent=5 // pred_check
        _
      $region26: #{tpu_custom_call.1} parent=5 // pred_check_branch
        %155 = sbr.rel (%p152) target = $region28
      $region27: #{tpu_custom_call.1} parent=5 // pred_region
        %s156 = ssub.s32 %s14, 1
        %s157 = sand.u32 %s41, 1
        %s158 = scalar_lea.sflag [#allocation5], %s157
        %s159 = sand.u32 %s41, 1
        %s160 = smul.addr %s159, 2
        %s161 = scalar_lea.vmem [#allocation4], %s160
        // Predicated region
        $region29: #{tpu_custom_call.1} parent=27 // pred_check
          %p162 = pneg %p54
        $region30: #{tpu_custom_call.1} parent=27 // pred_check_branch
          %164 = sbr.rel (%p162) target = $region32
        $region31: #{tpu_custom_call.1} parent=27 // pred_region
          %165 = dma.done %s158, 32
        $region32: #{tpu_custom_call.1} parent=27 // pred_fallthru
          _
        %s166 = sand.u32 %s41, 1
        %s167 = scalar_lea.sflag [#allocation5], %s166
        %s168 = sand.u32 %s41, 1
        %s169 = smul.addr %s168, 2
        %s170 = scalar_lea.vmem [#allocation4], %s169
        %p171 = pneg %p54
        %p172 = pneg %p51
        %p173 = scmp.lt.s32.totalorder %s23, 1
        %s174 = scalar_select %p173, %s23, 1
        %s175 = scalar_lea.vmem %s1, %s174
        %p176 = pneg %p80
        %p177 = pneg %p77
        %p178 = pneg %p106
        %p179 = pneg %p103
        %s180 = sand.u32 %s93, 1
        %s181 = scalar_lea.sflag [#allocation6], %s180
        %s182 = sand.u32 %s93, 1
        %s183 = smul.addr %s182, 2
        %s184 = scalar_lea.vmem [#allocation7], %s183
        %p185 = scmp.lt.s32.totalorder %s23, 1
        %s186 = scalar_select %p185, %s23, 1
        %s187 = scalar_lea.vmem %s1, %s186
        %p188 = scmp.eq.s32.totalorder %s24, 0
        // Predicated region
        $region33: #{tpu_custom_call.1} parent=27 // pred_check
          %p189 = pneg %p188
        $region34: #{tpu_custom_call.1} parent=27 // pred_check_branch
          %191 = sbr.rel (%p189) target = $region36
        $region35: #{tpu_custom_call.1} parent=27 // pred_region
          %192 = vst [vmem:[#allocation2] sm:$0x1] 0.0
          %193 = vst [vmem:[#allocation3] sm:$0x1] 0.0
        $region36: #{tpu_custom_call.1} parent=27 // pred_fallthru
          _
        %v194 = vld [vmem:[%s161] sm:$0x3]
        %v195 = vld [vmem:[%s187] sm:$0x1]
        %v197 = vlaneseq
        %v198 = vshrl.u32 %v197, 7
        %v199 = vsub.s32 0, %v198
        %v200 = vrot.slane %v195, %v199
        %v202 = vsub.f32 %v194, %v200
        %v203 = vld [vmem:[#allocation2] sm:$0x1]
        %vm204 = vcmask 1041408
        %v205 = vsel %vm204, %v202, 0.0
        %v206 = vrot.slane %v205, 4
        %v207 = vadd.f32 %v205, %v206
        %v208 = vrot.slane %v207, 2
        %v209 = vadd.f32 %v207, %v208
        %v210 = vrot.slane %v209, 1
        %v211 = vadd.f32 %v209, %v210
        %v212 = vadd.f32 %v203, %v211
        %213 = vst [vmem:[#allocation2] sm:$0x1] %v212
        %v214 = vld [vmem:[#allocation3] sm:$0x1]
        %v215 = vmul.f32 %v202, %v202
        %v216 = vsel %vm204, %v215, 0.0
        %v217 = vrot.slane %v216, 4
        %v218 = vadd.f32 %v216, %v217
        %v219 = vrot.slane %v218, 2
        %v220 = vadd.f32 %v218, %v219
        %v221 = vrot.slane %v220, 1
        %v222 = vadd.f32 %v220, %v221
        %v223 = vadd.f32 %v214, %v222
        %224 = vst [vmem:[#allocation3] sm:$0x1] %v223
        // Predicated region
        $region37: #{tpu_custom_call.1} parent=27 // pred_check
          %p225 = pneg %p188
        $region38: #{tpu_custom_call.1} parent=27 // pred_check_branch
          %227 = sbr.rel (%p225) target = $region40
        $region39: #{tpu_custom_call.1} parent=27 // pred_region
          %v228 = vld [vmem:[#allocation2] sm:$0x1]
          %230 = vrot.lane.b32.xlu0 %v228, 96
          %v231 = vpop.permute.xlu0 %230
          %v233 = vadd.f32 %v228, %v231
          %234 = vrot.lane.b32.xlu0 %v228, 64
          %v235 = vpop.permute.xlu0 %234
          %v237 = vadd.f32 %v233, %v235
          %238 = vrot.lane.b32.xlu0 %v228, 32
          %v239 = vpop.permute.xlu0 %238
          %v241 = vadd.f32 %v237, %v239
          %v242 = vld [vmem:[#allocation3] sm:$0x1]
          %244 = vrot.lane.b32.xlu0 %v242, 96
          %v245 = vpop.permute.xlu0 %244
          %v247 = vadd.f32 %v242, %v245
          %248 = vrot.lane.b32.xlu0 %v242, 64
          %v249 = vpop.permute.xlu0 %248
          %v251 = vadd.f32 %v247, %v249
          %252 = vrot.lane.b32.xlu0 %v242, 32
          %v253 = vpop.permute.xlu0 %252
          %v255 = vadd.f32 %v251, %v253
          %v256 = vld [vmem:[%s187] sm:$0x1]
          %v257 = vmul.f32 %v241, 0.125
          %v258 = vmul.f32 %v257, 8.0
          %v259 = vmul.f32 %v258, %v257
          %v260 = vsub.f32 %v255, %v259
          %v261 = vmul.f32 %v260, 0.14285715
          %v262 = vmax.f32 %v261, 0.0
          %v263 = vadd.f32 %v257, %v256
          %vm264 = vcmask 253952
          %265 = vst.msk [vmem:[%s184] sm:$0x1] %vm264, %v263
          %v266 = vrsqrt.pop %v262
          %v267 = vmul.f32 %v262, %v266
          %vm268 = vcmp.eq.f32.partialorder %v262, inf
          %v269 = vsel %vm268, %v262, %v267
          %vm270 = vcmp.eq.f32.partialorder %v262, 0.0
          %v271 = vand.u32 %v262, 2147483648
          %v272 = vsel %vm270, %v271, %v269
          %273 = vst.msk [vmem:[%s184 + $0x1] sm:$0x1] %vm264, %v272
        $region40: #{tpu_custom_call.1} parent=27 // pred_fallthru
          _
        %s274 = sand.u32 %s93, 1
        %s275 = scalar_lea.sflag [#allocation6], %s274
        %s276 = sand.u32 %s93, 1
        %s277 = smul.addr %s276, 2
        %s278 = scalar_lea.vmem [#allocation7], %s277
        // Predicated region
        $region41: #{tpu_custom_call.1} parent=27 // pred_check
          %p279 = pneg %p103
        $region42: #{tpu_custom_call.1} parent=27 // pred_check_branch
          %281 = sbr.rel (%p279) target = $region44
        $region43: #{tpu_custom_call.1} parent=27 // pred_region
          %s283 = ssub.s32 32, 32
          %284 = vsyncadd %s275, %s283
          %s285 = smul.addr %s23, 32
          %s286 = scalar_lea.hbm %s2, %s285
          %s288 = sshll.u32 %s278, 4
          %s289 = int_to_ptr.vmem [resolvable:$true] %s288
          %291 = dma.vmem_to_hbm [thread:$0]  %s289, 32, %s286, %s275
        $region44: #{tpu_custom_call.1} parent=27 // pred_fallthru
          _
      $region28: #{tpu_custom_call.1} parent=5 // pred_fallthru
        _
      %p292 = scmp.le.s32.totalorder 2, %s14
      // Predicated region
      $region45: #{tpu_custom_call.1} parent=5 // pred_check
        %p293 = pneg %p292
      $region46: #{tpu_custom_call.1} parent=5 // pred_check_branch
        %295 = sbr.rel (%p293) target = $region48
      $region47: #{tpu_custom_call.1} parent=5 // pred_region
        %s296 = ssub.s32 %s14, 2
        // Predicated region
        $region49: #{tpu_custom_call.1} parent=47 // pred_check
          %p297 = pneg %p109
        $region50: #{tpu_custom_call.1} parent=47 // pred_check_branch
          %299 = sbr.rel (%p297) target = $region52
        $region51: #{tpu_custom_call.1} parent=47 // pred_region
          %s300 = sand.u32 %s94, 1
          %s301 = scalar_lea.sflag [#allocation6], %s300
          %s302 = sand.u32 %s94, 1
          %s303 = smul.addr %s302, 2
          %s304 = scalar_lea.vmem [#allocation7], %s303
          %305 = dma.done %s301, 32
        $region52: #{tpu_custom_call.1} parent=47 // pred_fallthru
          _
      $region48: #{tpu_custom_call.1} parent=5 // pred_fallthru
        _
    $region6: #{tpu_custom_call.1} parent=1 // loop_footer
      %s18 = sadd.s32 1, %s14
    $region7: #{tpu_custom_call.1} parent=1 // loop_footer_branch
      %13 = sbr.rel target = $region3
    $region8: #{tpu_custom_call.1} parent=1 // loop_exit
      _
    %306 = vsyncpa [#allocation5], 1
    %s307 = scalar_lea.sflag [#allocation5], 1
    %308 = vsyncpa %s307, 1
    %309 = vsyncpa [#allocation6], 1
    %s310 = scalar_lea.sflag [#allocation6], 1
    %311 = vsyncpa %s310, 1

</llo_original>
